<compile_context>
chip_gen: v5e
topology: v5e:2x2
jax: 0.10.0
libtpu: 0.0.40
codegen_flags: <defaults>
</compile_context>

<pallas_src>
import jax
import jax.numpy as jnp
from jax.experimental import pallas as pl
from jax.experimental.pallas import tpu as pltpu


def simple_mlp2_kernel(x_ref, w1_ref, b1_ref, w2a_ref, b2a_ref, out_ref):
    Bt, L, Din = x_ref.shape
    O = w2a_ref.shape[1] - 1          # last column of W2_aug is the score column

    # Token-major view: MXU M-dimension = Bt * L (leading-dim merge only,
    # last dim untouched -> layout-natural, no relayout).
    x = x_ref[...].reshape(Bt * L, Din).astype(w1_ref.dtype)

    # MLP: Linear -> ReLU -> (Dropout: identity in eval) -> Linear (+ folded score)
    h = jnp.dot(x, w1_ref[...], preferred_element_type=jnp.float32) + b1_ref[...]
    h = jnp.maximum(h, 0.0)
    yaug = jnp.dot(h.astype(w2a_ref.dtype), w2a_ref[...],
                   preferred_element_type=jnp.float32) + b2a_ref[...]   # (Bt*L, O+1)

    y = yaug[:, :O]                   # per-token outputs       (Bt*L, O)
    s = yaug[:, O:O + 1]              # per-token scores        (Bt*L, 1)

    # Per-batch-element softmax over the sequence axis, then weighted sum.
    yb = y.reshape(Bt, L, O)
    sb = s.reshape(Bt, L, 1)
    m = jnp.max(sb, axis=1, keepdims=True)
    e = jnp.exp(sb - m)
    w = e / jnp.sum(e, axis=1, keepdims=True)     # exact normalization

    out_ref[...] = jnp.sum(yb * w, axis=1).astype(out_ref.dtype)   # (Bt, O)


def _default_num_steps():
    """2 balanced grid steps on dual-TC v7x; 1 step on single-TC v5e/v6e."""
    try:
        kind = jax.devices()[0].device_kind.lower()
    except Exception:
        kind = ""
    return 2 if "v7" in kind else 1


def simple_mlp2(x, seq_lengths, params, *, num_steps=None, mxu_dtype=None,
                vmem_limit_bytes=None):
    """x: (B, L, D_in) f32.  seq_lengths: (B,) int32 (unused, as in PyTorch)."""
    del seq_lengths  # not used in the reference forward (no masking)
    w1, b1, w2, b2, ws, bs = params
    B, L, Din = x.shape
    H = w1.shape[1]
    O = w2.shape[1]

    # Fold the score projection into the second matmul (one-time param prep,
    # done at highest precision so the fold itself adds no numeric drift).
    hp = jax.lax.Precision.HIGHEST
    w2_aug = jnp.concatenate([w2, jnp.dot(w2, ws, precision=hp)], axis=1)          # (H, O+1)
    b2_aug = jnp.concatenate([b2, jnp.dot(b2, ws, precision=hp) + bs.reshape(1, 1)],
                             axis=1)                                                # (1, O+1)

    if mxu_dtype is not None:
        # bf16 MXU operands, f32 accumulation: halves x HBM traffic at large B.
        x = x.astype(mxu_dtype)
        w1 = w1.astype(mxu_dtype)
        w2_aug = w2_aug.astype(mxu_dtype)

    # ---- grid sizing: block size must divide B exactly (no pad path). ----
    if num_steps is None:
        num_steps = _default_num_steps()
    num_steps = max(1, min(int(num_steps), B))
    while B % num_steps != 0:
        num_steps -= 1
    Bt = B // num_steps

    # Keep the (lane-padded to 128, double-buffered) x block comfortably inside
    # the default scoped-VMEM budget on every generation (v7x: 32 MiB scoped).
    bytes_per_batch_row = L * max(Din, 128) * 4
    max_bt = max(1, (4 << 20) // bytes_per_batch_row)     # ~4 MiB per x buffer
    while Bt > max_bt and num_steps < B:
        num_steps += 1
        while B % num_steps != 0 and num_steps < B:
            num_steps += 1
        Bt = B // num_steps

    out = pl.pallas_call(
        simple_mlp2_kernel,
        out_shape=jax.ShapeDtypeStruct((num_steps, Bt, O), jnp.float32),
        grid=(num_steps,),
        in_specs=[
            pl.BlockSpec((Bt, L, Din), lambda b: (b, 0, 0)),
            pl.BlockSpec((Din, H), lambda b: (0, 0)),
            pl.BlockSpec((1, H), lambda b: (0, 0)),
            pl.BlockSpec((H, O + 1), lambda b: (0, 0)),
            pl.BlockSpec((1, O + 1), lambda b: (0, 0)),
        ],
        # Leading (grid) dim squeezed; trailing block dims equal the full array
        # dims, so there are never unaligned second-minor block offsets.
        out_specs=pl.BlockSpec((None, Bt, O), lambda b: (b, 0, 0)),
        compiler_params=pltpu.CompilerParams(
            dimension_semantics=("parallel",),
            vmem_limit_bytes=vmem_limit_bytes),
    )(x, w1, b1, w2_aug, b2_aug)

    return out.reshape(B, O)   # row-major identical reshape, free


def init_params(key, input_size, hidden_size, output_size):
    """Deterministic synthetic params (shapes follow nn.Linear; stored as (in, out))."""
    k1, k2, k3, k4, k5, k6 = jax.random.split(key, 6)
    scale1 = 1.0 / jnp.sqrt(input_size)
    scale2 = 1.0 / jnp.sqrt(hidden_size)
    scale3 = 1.0 / jnp.sqrt(output_size)
    w1 = jax.random.uniform(k1, (input_size, hidden_size), jnp.float32, -scale1, scale1)
    b1 = jax.random.uniform(k2, (1, hidden_size), jnp.float32, -scale1, scale1)
    w2 = jax.random.uniform(k3, (hidden_size, output_size), jnp.float32, -scale2, scale2)
    b2 = jax.random.uniform(k4, (1, output_size), jnp.float32, -scale2, scale2)
    ws = jax.random.uniform(k5, (output_size, 1), jnp.float32, -scale3, scale3)
    bs = jax.random.uniform(k6, (1, 1), jnp.float32, -scale3, scale3)
    return w1, b1, w2, b2, ws, bs


def reference(x, params):
    w1, b1, w2, b2, ws, bs = params
    h = jnp.maximum(x @ w1 + b1, 0.0)
    y = h @ w2 + b2
    s = y @ ws + bs                      # (B, L, 1)
    w = jax.nn.softmax(s, axis=1)        # softmax over sequence dim
    return jnp.sum(y * w, axis=1)        # (B, O)


if __name__ == "__main__":
    B, L = 24, 8
    input_size, hidden_size, output_size = 32, 32, 16

    key = jax.random.PRNGKey(0)
    kx, kp = jax.random.split(key)
    x = jax.random.normal(kx, (B, L, input_size), jnp.float32)
    seq_lengths = jnp.full((B,), L, jnp.int32)
    params = init_params(kp, input_size, hidden_size, output_size)

    ref = reference(x, params)

    # Default f32-operand path: per-chip grid (1 step v5e/v6e, 2 steps v7x),
    # no padding, exact softmax division.  Remaining tolerance only covers
    # MXU f32-emulation differences between the XLA reference and the kernel.
    out = jax.block_until_ready(simple_mlp2(x, seq_lengths, params))
    assert out.shape == (B, output_size)
    assert jnp.allclose(out, ref, atol=5e-4, rtol=5e-4), (out, ref)

    # bf16 MXU-operand / f32-accumulation path (the large-B, HBM-bound config),
    # exercised with 2 balanced grid steps.
    out_bf16 = jax.block_until_ready(
        simple_mlp2(x, seq_lengths, params, num_steps=2, mxu_dtype=jnp.bfloat16))
    assert out_bf16.shape == (B, output_size)
    assert jnp.allclose(out_bf16, ref, atol=2e-2, rtol=2e-2), (out_bf16, ref)

    print("KERNEL_OK")
</pallas_src>

<mosaic_0001>
module attributes {stable_mosaic.version = 11 : i64} {
  func.func @simple_mlp2_kernel(%arg0: i32, %arg1: memref<24x8x32xf32, #tpu.memory_space<vmem>>, %arg2: memref<32x32xf32, #tpu.memory_space<vmem>>, %arg3: memref<1x32xf32, #tpu.memory_space<vmem>>, %arg4: memref<32x17xf32, #tpu.memory_space<vmem>>, %arg5: memref<1x17xf32, #tpu.memory_space<vmem>>, %arg6: memref<1x24x16xf32, #tpu.memory_space<vmem>>) attributes {dimension_semantics = [#tpu.dimension_semantics<parallel>], iteration_bounds = array<i64: 1>, scalar_prefetch = 0 : i64, scratch_operands = 0 : i64, tpu.core_type = #tpu.core_type<tc>, window_params = [{transform_indices = @transform_0, window_bounds = array<i64: 24, 8, 32>}, {pipeline_mode = #tpu.pipeline_mode<synchronous>, transform_indices = @transform_1, window_bounds = array<i64: 32, 32>}, {pipeline_mode = #tpu.pipeline_mode<synchronous>, transform_indices = @transform_2, window_bounds = array<i64: 1, 32>}, {pipeline_mode = #tpu.pipeline_mode<synchronous>, transform_indices = @transform_3, window_bounds = array<i64: 32, 17>}, {pipeline_mode = #tpu.pipeline_mode<synchronous>, transform_indices = @transform_4, window_bounds = array<i64: 1, 17>}, {transform_indices = @transform_5, window_bounds = array<i64: 1, 24, 16>}]} {
    %c0 = arith.constant 0 : index
    %c0_0 = arith.constant 0 : index
    %c0_1 = arith.constant 0 : index
    %0 = vector.load %arg1[%c0, %c0_0, %c0_1] : memref<24x8x32xf32, #tpu.memory_space<vmem>>, vector<24x8x32xf32>
    %1 = vector.shape_cast %0 : vector<24x8x32xf32> to vector<192x32xf32>
    %c0_2 = arith.constant 0 : index
    %c0_3 = arith.constant 0 : index
    %2 = vector.load %arg2[%c0_2, %c0_3] : memref<32x32xf32, #tpu.memory_space<vmem>>, vector<32x32xf32>
    %cst = arith.constant dense<0.000000e+00> : vector<192x32xf32>
    %3 = tpu.matmul %1, %2, %cst {dimension_numbers = #tpu.dot_dimension_numbers<[1], [0], [0], [1], [0, 0, 1, 1], [], []>} : vector<192x32xf32>, vector<32x32xf32>, vector<192x32xf32> -> vector<192x32xf32>
    %c0_4 = arith.constant 0 : index
    %c0_5 = arith.constant 0 : index
    %4 = vector.load %arg3[%c0_4, %c0_5] : memref<1x32xf32, #tpu.memory_space<vmem>>, vector<1x32xf32>
    %5 = vector.broadcast %4 : vector<1x32xf32> to vector<192x32xf32>
    %6 = arith.addf %3, %5 : vector<192x32xf32>
    %cst_6 = arith.constant 0.000000e+00 : f32
    %7 = vector.broadcast %cst_6 : f32 to vector<192x32xf32>
    %8 = arith.maximumf %6, %7 : vector<192x32xf32>
    %c0_7 = arith.constant 0 : index
    %c0_8 = arith.constant 0 : index
    %9 = vector.load %arg4[%c0_7, %c0_8] : memref<32x17xf32, #tpu.memory_space<vmem>>, vector<32x17xf32>
    %cst_9 = arith.constant dense<0.000000e+00> : vector<192x17xf32>
    %10 = tpu.matmul %8, %9, %cst_9 {dimension_numbers = #tpu.dot_dimension_numbers<[1], [0], [0], [1], [0, 0, 1, 1], [], []>} : vector<192x32xf32>, vector<32x17xf32>, vector<192x17xf32> -> vector<192x17xf32>
    %c0_10 = arith.constant 0 : index
    %c0_11 = arith.constant 0 : index
    %11 = vector.load %arg5[%c0_10, %c0_11] : memref<1x17xf32, #tpu.memory_space<vmem>>, vector<1x17xf32>
    %12 = vector.broadcast %11 : vector<1x17xf32> to vector<192x17xf32>
    %13 = arith.addf %10, %12 : vector<192x17xf32>
    %14 = vector.extract_strided_slice %13 {offsets = [0, 0], sizes = [192, 16], strides = [1, 1]} : vector<192x17xf32> to vector<192x16xf32>
    %15 = vector.extract_strided_slice %13 {offsets = [0, 16], sizes = [192, 1], strides = [1, 1]} : vector<192x17xf32> to vector<192x1xf32>
    %16 = vector.shape_cast %14 : vector<192x16xf32> to vector<24x8x16xf32>
    %17 = vector.shape_cast %15 : vector<192x1xf32> to vector<24x8x1xf32>
    %cst_12 = arith.constant dense<0xFF800000> : vector<24x1xf32>
    %18 = vector.multi_reduction <maximumf>, %17, %cst_12 [1] : vector<24x8x1xf32> to vector<24x1xf32>
    %19 = vector.shape_cast %18 : vector<24x1xf32> to vector<24x1x1xf32>
    %20 = vector.broadcast %19 : vector<24x1x1xf32> to vector<24x8x1xf32>
    %21 = arith.subf %17, %20 : vector<24x8x1xf32>
    %22 = math.exp %21 : vector<24x8x1xf32>
    %cst_13 = arith.constant dense<0.000000e+00> : vector<24x1xf32>
    %23 = vector.multi_reduction <add>, %22, %cst_13 [1] : vector<24x8x1xf32> to vector<24x1xf32>
    %24 = vector.shape_cast %23 : vector<24x1xf32> to vector<24x1x1xf32>
    %25 = vector.broadcast %24 : vector<24x1x1xf32> to vector<24x8x1xf32>
    %26 = arith.divf %22, %25 : vector<24x8x1xf32>
    %27 = vector.broadcast %26 : vector<24x8x1xf32> to vector<24x8x16xf32>
    %28 = arith.mulf %16, %27 : vector<24x8x16xf32>
    %cst_14 = arith.constant dense<0.000000e+00> : vector<24x16xf32>
    %29 = vector.multi_reduction <add>, %28, %cst_14 [1] : vector<24x8x16xf32> to vector<24x16xf32>
    %c0_15 = arith.constant 0 : index
    %c0_16 = arith.constant 0 : index
    %c0_17 = arith.constant 0 : index
    %30 = vector.load %arg6[%c0_15, %c0_16, %c0_17] : memref<1x24x16xf32, #tpu.memory_space<vmem>>, vector<1x24x16xf32>
    %31 = vector.shape_cast %30 : vector<1x24x16xf32> to vector<24x16xf32>
    %32 = vector.shape_cast %29 : vector<24x16xf32> to vector<1x24x16xf32>
    tpu.vector_store %arg6[%c0_15, %c0_16, %c0_17], %32 {strides = array<i32>} : memref<1x24x16xf32, #tpu.memory_space<vmem>>, vector<1x24x16xf32>,
    return
  }
  func.func @transform_0(%arg0: i32) -> (i32, i32, i32) {
    %c0_i32 = arith.constant 0 : i32
    %c0_i32_0 = arith.constant 0 : i32
    %c0_i32_1 = arith.constant 0 : i32
    return %arg0, %c0_i32, %c0_i32_0 : i32, i32, i32
  }
  func.func @transform_1(%arg0: i32) -> (i32, i32) {
    %c0_i32 = arith.constant 0 : i32
    %c0_i32_0 = arith.constant 0 : i32
    %c0_i32_1 = arith.constant 0 : i32
    return %c0_i32, %c0_i32_0 : i32, i32
  }
  func.func @transform_2(%arg0: i32) -> (i32, i32) {
    %c0_i32 = arith.constant 0 : i32
    %c0_i32_0 = arith.constant 0 : i32
    %c0_i32_1 = arith.constant 0 : i32
    return %c0_i32, %c0_i32_0 : i32, i32
  }
  func.func @transform_3(%arg0: i32) -> (i32, i32) {
    %c0_i32 = arith.constant 0 : i32
    %c0_i32_0 = arith.constant 0 : i32
    %c0_i32_1 = arith.constant 0 : i32
    return %c0_i32, %c0_i32_0 : i32, i32
  }
  func.func @transform_4(%arg0: i32) -> (i32, i32) {
    %c0_i32 = arith.constant 0 : i32
    %c0_i32_0 = arith.constant 0 : i32
    %c0_i32_1 = arith.constant 0 : i32
    return %c0_i32, %c0_i32_0 : i32, i32
  }
  func.func @transform_5(%arg0: i32) -> (i32, i32, i32) {
    %c0_i32 = arith.constant 0 : i32
    %c0_i32_0 = arith.constant 0 : i32
    %c0_i32_1 = arith.constant 0 : i32
    return %arg0, %c0_i32, %c0_i32_0 : i32, i32, i32
  }
}

</mosaic_0001>

<llo_original>
// kernel: tpu_custom_call.1
$region0: #{tpu_custom_call.1}
  #allocation0 [shape = 'u32[]', space=smem, size = 0x4, offset = 0x4, fixed_abs, tag = 'smem constant byte address 0x4 - core index']
  #allocation1 [shape = 'u32[72,128]{1,0:T(1,128)}', space=vmem, size = 0x9000, scoped, tag = 'internal scratch']
  %s0 = inlined_call_operand.hbm [shape: f32[24,8,32], index: 0, kind: input, shape index: {}]
  %s1 = inlined_call_operand.vmem [shape: f32[32,32], index: 1, kind: input, shape index: {}]
  %s2 = inlined_call_operand.vmem [shape: f32[1,32], index: 2, kind: input, shape index: {}]
  %s3 = inlined_call_operand.vmem [shape: f32[32,17], index: 3, kind: input, shape index: {}]
  %s4 = inlined_call_operand.vmem [shape: f32[1,17], index: 4, kind: input, shape index: {}]
  %s5 = inlined_call_operand.vmem [shape: f32[1,24,16], index: 5, kind: output, shape index: {}]
  %s6 = sld [smem:[#allocation0]]
  $region34: #{tpu_custom_call.1} parent=0
    _
  %s8 = ssub.s32 1, %s6
  %s9 = scalar_select 0, %s8, %s6
  $region1: #{tpu_custom_call.1} parent=0
    #allocation2 [shape = 'u8[98304]{0}', space=vmem, size = 0x18000, scoped, tag = 'input window, operand 0, single buffered']
    #allocation3 [shape = 's32[1]{0}', space=sflag, size = 0x4, scoped, tag = 'scoped memory for tpu_custom_call.1']
    %10 = vsyncpa [#allocation3], 0
    // Predicated region
    $region2: #{tpu_custom_call.1} parent=1 // pred_check
      _
    $region3: #{tpu_custom_call.1} parent=1 // pred_check_branch
      %12 = sbr.rel (0) target = $region5
    $region4: #{tpu_custom_call.1} parent=1 // pred_region
      %14 = vsyncadd [#allocation3], 0
      %s15 = sshll.u32 %s0, 4
      %s16 = int_to_ptr.hbm [resolvable:$true] %s15
      %s17 = sshll.u32 [#allocation2], 4
      %s18 = int_to_ptr.vmem [resolvable:$true] %s17
      %23 = dma.hbm_to_vmem [thread:$0]  %s16, 3072, %s18, [#allocation3], 128, 128, 8
    $region5: #{tpu_custom_call.1} parent=1 // pred_fallthru
      _
    // Predicated region
    $region6: #{tpu_custom_call.1} parent=1 // pred_check
      _
    $region7: #{tpu_custom_call.1} parent=1 // pred_check_branch
      %25 = sbr.rel (0) target = $region9
    $region8: #{tpu_custom_call.1} parent=1 // pred_region
      _
    $region9: #{tpu_custom_call.1} parent=1 // pred_fallthru
      _
    // Predicated region
    $region10: #{tpu_custom_call.1} parent=1 // pred_check
      _
    $region11: #{tpu_custom_call.1} parent=1 // pred_check_branch
      %27 = sbr.rel (0) target = $region13
    $region12: #{tpu_custom_call.1} parent=1 // pred_region
      _
    $region13: #{tpu_custom_call.1} parent=1 // pred_fallthru
      _
    // Predicated region
    $region14: #{tpu_custom_call.1} parent=1 // pred_check
      _
    $region15: #{tpu_custom_call.1} parent=1 // pred_check_branch
      %29 = sbr.rel (0) target = $region17
    $region16: #{tpu_custom_call.1} parent=1 // pred_region
      _
    $region17: #{tpu_custom_call.1} parent=1 // pred_fallthru
      _
    // Predicated region
    $region18: #{tpu_custom_call.1} parent=1 // pred_check
      _
    $region19: #{tpu_custom_call.1} parent=1 // pred_check_branch
      %31 = sbr.rel (0) target = $region21
    $region20: #{tpu_custom_call.1} parent=1 // pred_region
      _
    $region21: #{tpu_custom_call.1} parent=1 // pred_fallthru
      _
    // Predicated region
    $region22: #{tpu_custom_call.1} parent=1 // pred_check
      _
    $region23: #{tpu_custom_call.1} parent=1 // pred_check_branch
      %33 = sbr.rel (0) target = $region25
    $region24: #{tpu_custom_call.1} parent=1 // pred_region
      %35 = dma.done [#allocation3], 3072
    $region25: #{tpu_custom_call.1} parent=1 // pred_fallthru
      _
    %v36 = vld [vmem:[#allocation2] sm:$0xff]
    %v37 = vld [vmem:[#allocation2 + $0x8] sm:$0xff]
    %v38 = vld [vmem:[#allocation2 + $0x10] sm:$0xff]
    %v39 = vld [vmem:[#allocation2 + $0x18] sm:$0xff]
    %v40 = vld [vmem:[#allocation2 + $0x20] sm:$0xff]
    %v41 = vld [vmem:[#allocation2 + $0x28] sm:$0xff]
    %v42 = vld [vmem:[#allocation2 + $0x30] sm:$0xff]
    %v43 = vld [vmem:[#allocation2 + $0x38] sm:$0xff]
    %v44 = vld [vmem:[#allocation2 + $0x40] sm:$0xff]
    %v45 = vld [vmem:[#allocation2 + $0x48] sm:$0xff]
    %v46 = vld [vmem:[#allocation2 + $0x50] sm:$0xff]
    %v47 = vld [vmem:[#allocation2 + $0x58] sm:$0xff]
    %v48 = vld [vmem:[#allocation2 + $0x60] sm:$0xff]
    %v49 = vld [vmem:[#allocation2 + $0x68] sm:$0xff]
    %v50 = vld [vmem:[#allocation2 + $0x70] sm:$0xff]
    %v51 = vld [vmem:[#allocation2 + $0x78] sm:$0xff]
    %v52 = vld [vmem:[#allocation2 + $0x80] sm:$0xff]
    %v53 = vld [vmem:[#allocation2 + $0x88] sm:$0xff]
    %v54 = vld [vmem:[#allocation2 + $0x90] sm:$0xff]
    %v55 = vld [vmem:[#allocation2 + $0x98] sm:$0xff]
    %v56 = vld [vmem:[#allocation2 + $0xa0] sm:$0xff]
    %v57 = vld [vmem:[#allocation2 + $0xa8] sm:$0xff]
    %v58 = vld [vmem:[#allocation2 + $0xb0] sm:$0xff]
    %v59 = vld [vmem:[#allocation2 + $0xb8] sm:$0xff]
    %v60 = vld [vmem:[%s1] sm:$0xff]
    %v61 = vld [vmem:[%s1 + $0x8] sm:$0xff]
    %v62 = vld [vmem:[%s1 + $0x10] sm:$0xff]
    %v63 = vld [vmem:[%s1 + $0x18] sm:$0xff]
    %v64 = vld [vmem:[%s2] sm:$0x1]
    %v66 = vperm.slane %v64, 0
    %vm68 = vcmask 261120
    %v70 = vsel %vm68, %v36, 0
    %v73 = vsel %vm68, %v37, 0
    %v76 = vsel %vm68, %v38, 0
    %v79 = vsel %vm68, %v39, 0
    %v82 = vsel %vm68, %v40, 0
    %v85 = vsel %vm68, %v41, 0
    %v88 = vsel %vm68, %v42, 0
    %v91 = vsel %vm68, %v43, 0
    %v94 = vsel %vm68, %v44, 0
    %v97 = vsel %vm68, %v45, 0
    %v100 = vsel %vm68, %v46, 0
    %v103 = vsel %vm68, %v47, 0
    %v106 = vsel %vm68, %v48, 0
    %v109 = vsel %vm68, %v49, 0
    %v112 = vsel %vm68, %v50, 0
    %v115 = vsel %vm68, %v51, 0
    %v118 = vsel %vm68, %v52, 0
    %v121 = vsel %vm68, %v53, 0
    %v124 = vsel %vm68, %v54, 0
    %v127 = vsel %vm68, %v55, 0
    %v130 = vsel %vm68, %v56, 0
    %v133 = vsel %vm68, %v57, 0
    %v136 = vsel %vm68, %v58, 0
    %v139 = vsel %vm68, %v59, 0
    %141 = vmatpush.msra.mxu0 0.0
    %142 = vmatpush.msra.mxu0 0.0
    %143 = vmatpush.msra.mxu0 0.0
    %144 = vmatpush.msra.mxu0 0.0
    %145 = vmatpush.msra.mxu0 0.0
    %146 = vmatpush.msra.mxu0 0.0
    %147 = vmatpush.msra.mxu0 0.0
    %148 = vmatpush.msra.mxu0 0.0
    %149 = vmatpush.msra.mxu0 0.0
    %150 = vmatpush.msra.mxu0 0.0
    %151 = vmatpush.msra.mxu0 0.0
    %152 = vmatpush.msra.mxu0 0.0
    %153 = vmatpush.msra.mxu0 %v63
    %154 = vmatpush.msra.mxu0 %v62
    %155 = vmatpush.msra.mxu0 %v61
    %156 = vmatpush.msra.mxu0 %v60
    %157 = vmatmul.f32.gmra.mxu0 %v70
    %v158 = vpop.f32.mrf.mxu0
    %v159 = vadd.f32 %v66, %v158
    %160 = vmatmul.f32.gmra.mxu0 %v73
    %v161 = vpop.f32.mrf.mxu0
    %v162 = vadd.f32 %v66, %v161
    %163 = vmatmul.f32.gmra.mxu0 %v76
    %v164 = vpop.f32.mrf.mxu0
    %v165 = vadd.f32 %v66, %v164
    %166 = vmatmul.f32.gmra.mxu0 %v79
    %v167 = vpop.f32.mrf.mxu0
    %v168 = vadd.f32 %v66, %v167
    %169 = vmatmul.f32.gmra.mxu0 %v82
    %v170 = vpop.f32.mrf.mxu0
    %v171 = vadd.f32 %v66, %v170
    %172 = vmatmul.f32.gmra.mxu0 %v85
    %v173 = vpop.f32.mrf.mxu0
    %v174 = vadd.f32 %v66, %v173
    %175 = vmatmul.f32.gmra.mxu0 %v88
    %v176 = vpop.f32.mrf.mxu0
    %v177 = vadd.f32 %v66, %v176
    %178 = vmatmul.f32.gmra.mxu0 %v91
    %v179 = vpop.f32.mrf.mxu0
    %v180 = vadd.f32 %v66, %v179
    %181 = vmatmul.f32.gmra.mxu0 %v94
    %v182 = vpop.f32.mrf.mxu0
    %v183 = vadd.f32 %v66, %v182
    %184 = vmatmul.f32.gmra.mxu0 %v97
    %v185 = vpop.f32.mrf.mxu0
    %v186 = vadd.f32 %v66, %v185
    %187 = vmatmul.f32.gmra.mxu0 %v100
    %v188 = vpop.f32.mrf.mxu0
    %v189 = vadd.f32 %v66, %v188
    %190 = vmatmul.f32.gmra.mxu0 %v103
    %v191 = vpop.f32.mrf.mxu0
    %v192 = vadd.f32 %v66, %v191
    %193 = vmatmul.f32.gmra.mxu0 %v106
    %v194 = vpop.f32.mrf.mxu0
    %v195 = vadd.f32 %v66, %v194
    %196 = vmatmul.f32.gmra.mxu0 %v109
    %v197 = vpop.f32.mrf.mxu0
    %v198 = vadd.f32 %v66, %v197
    %199 = vmatmul.f32.gmra.mxu0 %v112
    %v200 = vpop.f32.mrf.mxu0
    %v201 = vadd.f32 %v66, %v200
    %202 = vmatmul.f32.gmra.mxu0 %v115
    %v203 = vpop.f32.mrf.mxu0
    %v204 = vadd.f32 %v66, %v203
    %205 = vmatmul.f32.gmra.mxu0 %v118
    %v206 = vpop.f32.mrf.mxu0
    %v207 = vadd.f32 %v66, %v206
    %208 = vmatmul.f32.gmra.mxu0 %v121
    %v209 = vpop.f32.mrf.mxu0
    %v210 = vadd.f32 %v66, %v209
    %211 = vmatmul.f32.gmra.mxu0 %v124
    %v212 = vpop.f32.mrf.mxu0
    %v213 = vadd.f32 %v66, %v212
    %214 = vmatmul.f32.gmra.mxu0 %v127
    %v215 = vpop.f32.mrf.mxu0
    %v216 = vadd.f32 %v66, %v215
    %217 = vmatmul.f32.gmra.mxu0 %v130
    %v218 = vpop.f32.mrf.mxu0
    %v219 = vadd.f32 %v66, %v218
    %220 = vmatmul.f32.gmra.mxu0 %v133
    %v221 = vpop.f32.mrf.mxu0
    %v222 = vadd.f32 %v66, %v221
    %223 = vmatmul.f32.gmra.mxu0 %v136
    %v224 = vpop.f32.mrf.mxu0
    %v225 = vadd.f32 %v66, %v224
    %226 = vmatmul.f32.gmra.mxu0 %v139
    %v227 = vpop.f32.mrf.mxu0
    %v228 = vadd.f32 %v66, %v227
    %229 = vdwg.mxu0
    %v230 = vmax.f32 %v159, 0.0
    %v231 = vmax.f32 %v162, 0.0
    %v232 = vmax.f32 %v165, 0.0
    %v233 = vmax.f32 %v168, 0.0
    %v234 = vmax.f32 %v171, 0.0
    %v235 = vmax.f32 %v174, 0.0
    %v236 = vmax.f32 %v177, 0.0
    %v237 = vmax.f32 %v180, 0.0
    %v238 = vmax.f32 %v183, 0.0
    %v239 = vmax.f32 %v186, 0.0
    %v240 = vmax.f32 %v189, 0.0
    %v241 = vmax.f32 %v192, 0.0
    %v242 = vmax.f32 %v195, 0.0
    %v243 = vmax.f32 %v198, 0.0
    %v244 = vmax.f32 %v201, 0.0
    %v245 = vmax.f32 %v204, 0.0
    %v246 = vmax.f32 %v207, 0.0
    %v247 = vmax.f32 %v210, 0.0
    %v248 = vmax.f32 %v213, 0.0
    %v249 = vmax.f32 %v216, 0.0
    %v250 = vmax.f32 %v219, 0.0
    %v251 = vmax.f32 %v222, 0.0
    %v252 = vmax.f32 %v225, 0.0
    %v253 = vmax.f32 %v228, 0.0
    %v254 = vld [vmem:[%s3] sm:$0xff]
    %v255 = vld [vmem:[%s3 + $0x8] sm:$0xff]
    %v256 = vld [vmem:[%s3 + $0x10] sm:$0xff]
    %v257 = vld [vmem:[%s3 + $0x18] sm:$0xff]
    %v258 = vld [vmem:[%s4] sm:$0x1]
    %v260 = vperm.slane %v258, 0
    %v263 = vsel %vm68, %v230, 0
    %v266 = vsel %vm68, %v231, 0
    %v269 = vsel %vm68, %v232, 0
    %v272 = vsel %vm68, %v233, 0
    %v275 = vsel %vm68, %v234, 0
    %v278 = vsel %vm68, %v235, 0
    %v281 = vsel %vm68, %v236, 0
    %v284 = vsel %vm68, %v237, 0
    %v287 = vsel %vm68, %v238, 0
    %v290 = vsel %vm68, %v239, 0
    %v293 = vsel %vm68, %v240, 0
    %v296 = vsel %vm68, %v241, 0
    %v299 = vsel %vm68, %v242, 0
    %v302 = vsel %vm68, %v243, 0
    %v305 = vsel %vm68, %v244, 0
    %v308 = vsel %vm68, %v245, 0
    %v311 = vsel %vm68, %v246, 0
    %v314 = vsel %vm68, %v247, 0
    %v317 = vsel %vm68, %v248, 0
    %v320 = vsel %vm68, %v249, 0
    %v323 = vsel %vm68, %v250, 0
    %v326 = vsel %vm68, %v251, 0
    %v329 = vsel %vm68, %v252, 0
    %v332 = vsel %vm68, %v253, 0
    %334 = vmatpush.msra.mxu0 0.0
    %335 = vmatpush.msra.mxu0 0.0
    %336 = vmatpush.msra.mxu0 0.0
    %337 = vmatpush.msra.mxu0 0.0
    %338 = vmatpush.msra.mxu0 0.0
    %339 = vmatpush.msra.mxu0 0.0
    %340 = vmatpush.msra.mxu0 0.0
    %341 = vmatpush.msra.mxu0 0.0
    %342 = vmatpush.msra.mxu0 0.0
    %343 = vmatpush.msra.mxu0 0.0
    %344 = vmatpush.msra.mxu0 0.0
    %345 = vmatpush.msra.mxu0 0.0
    %346 = vmatpush.msra.mxu0 %v257
    %347 = vmatpush.msra.mxu0 %v256
    %348 = vmatpush.msra.mxu0 %v255
    %349 = vmatpush.msra.mxu0 %v254
    %350 = vmatmul.f32.gmra.mxu0 %v263
    %v351 = vpop.f32.mrf.mxu0
    %v352 = vadd.f32 %v260, %v351
    %353 = vmatmul.f32.gmra.mxu0 %v266
    %v354 = vpop.f32.mrf.mxu0
    %v355 = vadd.f32 %v260, %v354
    %356 = vmatmul.f32.gmra.mxu0 %v269
    %v357 = vpop.f32.mrf.mxu0
    %v358 = vadd.f32 %v260, %v357
    %359 = vmatmul.f32.gmra.mxu0 %v272
    %v360 = vpop.f32.mrf.mxu0
    %v361 = vadd.f32 %v260, %v360
    %362 = vmatmul.f32.gmra.mxu0 %v275
    %v363 = vpop.f32.mrf.mxu0
    %v364 = vadd.f32 %v260, %v363
    %365 = vmatmul.f32.gmra.mxu0 %v278
    %v366 = vpop.f32.mrf.mxu0
    %v367 = vadd.f32 %v260, %v366
    %368 = vmatmul.f32.gmra.mxu0 %v281
    %v369 = vpop.f32.mrf.mxu0
    %v370 = vadd.f32 %v260, %v369
    %371 = vmatmul.f32.gmra.mxu0 %v284
    %v372 = vpop.f32.mrf.mxu0
    %v373 = vadd.f32 %v260, %v372
    %374 = vmatmul.f32.gmra.mxu0 %v287
    %v375 = vpop.f32.mrf.mxu0
    %v376 = vadd.f32 %v260, %v375
    %377 = vmatmul.f32.gmra.mxu0 %v290
    %v378 = vpop.f32.mrf.mxu0
    %v379 = vadd.f32 %v260, %v378
    %380 = vmatmul.f32.gmra.mxu0 %v293
    %v381 = vpop.f32.mrf.mxu0
    %v382 = vadd.f32 %v260, %v381
    %383 = vmatmul.f32.gmra.mxu0 %v296
    %v384 = vpop.f32.mrf.mxu0
    %v385 = vadd.f32 %v260, %v384
    %386 = vmatmul.f32.gmra.mxu0 %v299
    %v387 = vpop.f32.mrf.mxu0
    %v388 = vadd.f32 %v260, %v387
    %389 = vmatmul.f32.gmra.mxu0 %v302
    %v390 = vpop.f32.mrf.mxu0
    %v391 = vadd.f32 %v260, %v390
    %392 = vmatmul.f32.gmra.mxu0 %v305
    %v393 = vpop.f32.mrf.mxu0
    %v394 = vadd.f32 %v260, %v393
    %395 = vmatmul.f32.gmra.mxu0 %v308
    %v396 = vpop.f32.mrf.mxu0
    %v397 = vadd.f32 %v260, %v396
    %398 = vmatmul.f32.gmra.mxu0 %v311
    %v399 = vpop.f32.mrf.mxu0
    %v400 = vadd.f32 %v260, %v399
    %401 = vmatmul.f32.gmra.mxu0 %v314
    %v402 = vpop.f32.mrf.mxu0
    %v403 = vadd.f32 %v260, %v402
    %404 = vmatmul.f32.gmra.mxu0 %v317
    %v405 = vpop.f32.mrf.mxu0
    %v406 = vadd.f32 %v260, %v405
    %407 = vmatmul.f32.gmra.mxu0 %v320
    %v408 = vpop.f32.mrf.mxu0
    %v409 = vadd.f32 %v260, %v408
    %410 = vmatmul.f32.gmra.mxu0 %v323
    %v411 = vpop.f32.mrf.mxu0
    %v412 = vadd.f32 %v260, %v411
    %413 = vmatmul.f32.gmra.mxu0 %v326
    %v414 = vpop.f32.mrf.mxu0
    %v415 = vadd.f32 %v260, %v414
    %416 = vmatmul.f32.gmra.mxu0 %v329
    %v417 = vpop.f32.mrf.mxu0
    %v418 = vadd.f32 %v260, %v417
    %419 = vmatmul.f32.gmra.mxu0 %v332
    %v420 = vpop.f32.mrf.mxu0
    %v421 = vadd.f32 %v260, %v420
    %422 = vdwg.mxu0
    %vm423 = vcmask 138368
    %v424 = vsel %vm423, %v352, -inf
    %v425 = vrot.slane %v424, 4
    %v426 = vmax.f32 %v424, %v425
    %v427 = vrot.slane %v426, 2
    %v428 = vmax.f32 %v426, %v427
    %v429 = vrot.slane %v428, 1
    %v430 = vmax.f32 %v428, %v429
    %v431 = vsel %vm423, %v355, -inf
    %v432 = vrot.slane %v431, 4
    %v433 = vmax.f32 %v431, %v432
    %v434 = vrot.slane %v433, 2
    %v435 = vmax.f32 %v433, %v434
    %v436 = vrot.slane %v435, 1
    %v437 = vmax.f32 %v435, %v436
    %v438 = vsel %vm423, %v358, -inf
    %v439 = vrot.slane %v438, 4
    %v440 = vmax.f32 %v438, %v439
    %v441 = vrot.slane %v440, 2
    %v442 = vmax.f32 %v440, %v441
    %v443 = vrot.slane %v442, 1
    %v444 = vmax.f32 %v442, %v443
    %v445 = vsel %vm423, %v361, -inf
    %v446 = vrot.slane %v445, 4
    %v447 = vmax.f32 %v445, %v446
    %v448 = vrot.slane %v447, 2
    %v449 = vmax.f32 %v447, %v448
    %v450 = vrot.slane %v449, 1
    %v451 = vmax.f32 %v449, %v450
    %v452 = vsel %vm423, %v364, -inf
    %v453 = vrot.slane %v452, 4
    %v454 = vmax.f32 %v452, %v453
    %v455 = vrot.slane %v454, 2
    %v456 = vmax.f32 %v454, %v455
    %v457 = vrot.slane %v456, 1
    %v458 = vmax.f32 %v456, %v457
    %v459 = vsel %vm423, %v367, -inf
    %v460 = vrot.slane %v459, 4
    %v461 = vmax.f32 %v459, %v460
    %v462 = vrot.slane %v461, 2
    %v463 = vmax.f32 %v461, %v462
    %v464 = vrot.slane %v463, 1
    %v465 = vmax.f32 %v463, %v464
    %v466 = vsel %vm423, %v370, -inf
    %v467 = vrot.slane %v466, 4
    %v468 = vmax.f32 %v466, %v467
    %v469 = vrot.slane %v468, 2
    %v470 = vmax.f32 %v468, %v469
    %v471 = vrot.slane %v470, 1
    %v472 = vmax.f32 %v470, %v471
    %v473 = vsel %vm423, %v373, -inf
    %v474 = vrot.slane %v473, 4
    %v475 = vmax.f32 %v473, %v474
    %v476 = vrot.slane %v475, 2
    %v477 = vmax.f32 %v475, %v476
    %v478 = vrot.slane %v477, 1
    %v479 = vmax.f32 %v477, %v478
    %v480 = vsel %vm423, %v376, -inf
    %v481 = vrot.slane %v480, 4
    %v482 = vmax.f32 %v480, %v481
    %v483 = vrot.slane %v482, 2
    %v484 = vmax.f32 %v482, %v483
    %v485 = vrot.slane %v484, 1
    %v486 = vmax.f32 %v484, %v485
    %v487 = vsel %vm423, %v379, -inf
    %v488 = vrot.slane %v487, 4
    %v489 = vmax.f32 %v487, %v488
    %v490 = vrot.slane %v489, 2
    %v491 = vmax.f32 %v489, %v490
    %v492 = vrot.slane %v491, 1
    %v493 = vmax.f32 %v491, %v492
    %v494 = vsel %vm423, %v382, -inf
    %v495 = vrot.slane %v494, 4
    %v496 = vmax.f32 %v494, %v495
    %v497 = vrot.slane %v496, 2
    %v498 = vmax.f32 %v496, %v497
    %v499 = vrot.slane %v498, 1
    %v500 = vmax.f32 %v498, %v499
    %v501 = vsel %vm423, %v385, -inf
    %v502 = vrot.slane %v501, 4
    %v503 = vmax.f32 %v501, %v502
    %v504 = vrot.slane %v503, 2
    %v505 = vmax.f32 %v503, %v504
    %v506 = vrot.slane %v505, 1
    %v507 = vmax.f32 %v505, %v506
    %v508 = vsel %vm423, %v388, -inf
    %v509 = vrot.slane %v508, 4
    %v510 = vmax.f32 %v508, %v509
    %v511 = vrot.slane %v510, 2
    %v512 = vmax.f32 %v510, %v511
    %v513 = vrot.slane %v512, 1
    %v514 = vmax.f32 %v512, %v513
    %v515 = vsel %vm423, %v391, -inf
    %v516 = vrot.slane %v515, 4
    %v517 = vmax.f32 %v515, %v516
    %v518 = vrot.slane %v517, 2
    %v519 = vmax.f32 %v517, %v518
    %v520 = vrot.slane %v519, 1
    %v521 = vmax.f32 %v519, %v520
    %v522 = vsel %vm423, %v394, -inf
    %v523 = vrot.slane %v522, 4
    %v524 = vmax.f32 %v522, %v523
    %v525 = vrot.slane %v524, 2
    %v526 = vmax.f32 %v524, %v525
    %v527 = vrot.slane %v526, 1
    %v528 = vmax.f32 %v526, %v527
    %v529 = vsel %vm423, %v397, -inf
    %v530 = vrot.slane %v529, 4
    %v531 = vmax.f32 %v529, %v530
    %v532 = vrot.slane %v531, 2
    %v533 = vmax.f32 %v531, %v532
    %v534 = vrot.slane %v533, 1
    %v535 = vmax.f32 %v533, %v534
    %v536 = vsel %vm423, %v400, -inf
    %v537 = vrot.slane %v536, 4
    %v538 = vmax.f32 %v536, %v537
    %v539 = vrot.slane %v538, 2
    %v540 = vmax.f32 %v538, %v539
    %v541 = vrot.slane %v540, 1
    %v542 = vmax.f32 %v540, %v541
    %v543 = vsel %vm423, %v403, -inf
    %v544 = vrot.slane %v543, 4
    %v545 = vmax.f32 %v543, %v544
    %v546 = vrot.slane %v545, 2
    %v547 = vmax.f32 %v545, %v546
    %v548 = vrot.slane %v547, 1
    %v549 = vmax.f32 %v547, %v548
    %v550 = vsel %vm423, %v406, -inf
    %v551 = vrot.slane %v550, 4
    %v552 = vmax.f32 %v550, %v551
    %v553 = vrot.slane %v552, 2
    %v554 = vmax.f32 %v552, %v553
    %v555 = vrot.slane %v554, 1
    %v556 = vmax.f32 %v554, %v555
    %v557 = vsel %vm423, %v409, -inf
    %v558 = vrot.slane %v557, 4
    %v559 = vmax.f32 %v557, %v558
    %v560 = vrot.slane %v559, 2
    %v561 = vmax.f32 %v559, %v560
    %v562 = vrot.slane %v561, 1
    %v563 = vmax.f32 %v561, %v562
    %v564 = vsel %vm423, %v412, -inf
    %v565 = vrot.slane %v564, 4
    %v566 = vmax.f32 %v564, %v565
    %v567 = vrot.slane %v566, 2
    %v568 = vmax.f32 %v566, %v567
    %v569 = vrot.slane %v568, 1
    %v570 = vmax.f32 %v568, %v569
    %v571 = vsel %vm423, %v415, -inf
    %v572 = vrot.slane %v571, 4
    %v573 = vmax.f32 %v571, %v572
    %v574 = vrot.slane %v573, 2
    %v575 = vmax.f32 %v573, %v574
    %v576 = vrot.slane %v575, 1
    %v577 = vmax.f32 %v575, %v576
    %v578 = vsel %vm423, %v418, -inf
    %v579 = vrot.slane %v578, 4
    %v580 = vmax.f32 %v578, %v579
    %v581 = vrot.slane %v580, 2
    %v582 = vmax.f32 %v580, %v581
    %v583 = vrot.slane %v582, 1
    %v584 = vmax.f32 %v582, %v583
    %v585 = vsel %vm423, %v421, -inf
    %v586 = vrot.slane %v585, 4
    %v587 = vmax.f32 %v585, %v586
    %v588 = vrot.slane %v587, 2
    %v589 = vmax.f32 %v587, %v588
    %v590 = vrot.slane %v589, 1
    %v591 = vmax.f32 %v589, %v590
    %v592 = vsub.f32 %v352, %v430
    %v593 = vsub.f32 %v355, %v437
    %v594 = vsub.f32 %v358, %v444
    %v595 = vsub.f32 %v361, %v451
    %v596 = vsub.f32 %v364, %v458
    %v597 = vsub.f32 %v367, %v465
    %v598 = vsub.f32 %v370, %v472
    %v599 = vsub.f32 %v373, %v479
    %v600 = vsub.f32 %v376, %v486
    %v601 = vsub.f32 %v379, %v493
    %v602 = vsub.f32 %v382, %v500
    %v603 = vsub.f32 %v385, %v507
    %v604 = vsub.f32 %v388, %v514
    %v605 = vsub.f32 %v391, %v521
    %v606 = vsub.f32 %v394, %v528
    %v607 = vsub.f32 %v397, %v535
    %v608 = vsub.f32 %v400, %v542
    %v609 = vsub.f32 %v403, %v549
    %v610 = vsub.f32 %v406, %v556
    %v611 = vsub.f32 %v409, %v563
    %v612 = vsub.f32 %v412, %v570
    %v613 = vsub.f32 %v415, %v577
    %v614 = vsub.f32 %v418, %v584
    %v615 = vsub.f32 %v421, %v591
    %v616 = vmul.f32 %v592, 1.442695
    %v617 = vpow.pop %v616
    %v618 = vmul.f32 %v593, 1.442695
    %v619 = vpow.pop %v618
    %v620 = vmul.f32 %v594, 1.442695
    %v621 = vpow.pop %v620
    %v622 = vmul.f32 %v595, 1.442695
    %v623 = vpow.pop %v622
    %v624 = vmul.f32 %v596, 1.442695
    %v625 = vpow.pop %v624
    %v626 = vmul.f32 %v597, 1.442695
    %v627 = vpow.pop %v626
    %v628 = vmul.f32 %v598, 1.442695
    %v629 = vpow.pop %v628
    %v630 = vmul.f32 %v599, 1.442695
    %v631 = vpow.pop %v630
    %v632 = vmul.f32 %v600, 1.442695
    %v633 = vpow.pop %v632
    %v634 = vmul.f32 %v601, 1.442695
    %v635 = vpow.pop %v634
    %v636 = vmul.f32 %v602, 1.442695
    %v637 = vpow.pop %v636
    %v638 = vmul.f32 %v603, 1.442695
    %v639 = vpow.pop %v638
    %v640 = vmul.f32 %v604, 1.442695
    %v641 = vpow.pop %v640
    %v642 = vmul.f32 %v605, 1.442695
    %v643 = vpow.pop %v642
    %v644 = vmul.f32 %v606, 1.442695
    %v645 = vpow.pop %v644
    %v646 = vmul.f32 %v607, 1.442695
    %v647 = vpow.pop %v646
    %v648 = vmul.f32 %v608, 1.442695
    %v649 = vpow.pop %v648
    %v650 = vmul.f32 %v609, 1.442695
    %v651 = vpow.pop %v650
    %v652 = vmul.f32 %v610, 1.442695
    %v653 = vpow.pop %v652
    %v654 = vmul.f32 %v611, 1.442695
    %v655 = vpow.pop %v654
    %v656 = vmul.f32 %v612, 1.442695
    %v657 = vpow.pop %v656
    %v658 = vmul.f32 %v613, 1.442695
    %v659 = vpow.pop %v658
    %v660 = vmul.f32 %v614, 1.442695
    %v661 = vpow.pop %v660
    %v662 = vmul.f32 %v615, 1.442695
    %v663 = vpow.pop %v662
    %v664 = vsel %vm423, %v617, 0.0
    %v665 = vrot.slane %v664, 4
    %v666 = vadd.f32 %v664, %v665
    %v667 = vrot.slane %v666, 2
    %v668 = vadd.f32 %v666, %v667
    %v669 = vrot.slane %v668, 1
    %v670 = vadd.f32 %v668, %v669
    %v671 = vsel %vm423, %v619, 0.0
    %v672 = vrot.slane %v671, 4
    %v673 = vadd.f32 %v671, %v672
    %v674 = vrot.slane %v673, 2
    %v675 = vadd.f32 %v673, %v674
    %v676 = vrot.slane %v675, 1
    %v677 = vadd.f32 %v675, %v676
    %v678 = vsel %vm423, %v621, 0.0
    %v679 = vrot.slane %v678, 4
    %v680 = vadd.f32 %v678, %v679
    %v681 = vrot.slane %v680, 2
    %v682 = vadd.f32 %v680, %v681
    %v683 = vrot.slane %v682, 1
    %v684 = vadd.f32 %v682, %v683
    %v685 = vsel %vm423, %v623, 0.0
    %v686 = vrot.slane %v685, 4
    %v687 = vadd.f32 %v685, %v686
    %v688 = vrot.slane %v687, 2
    %v689 = vadd.f32 %v687, %v688
    %v690 = vrot.slane %v689, 1
    %v691 = vadd.f32 %v689, %v690
    %v692 = vsel %vm423, %v625, 0.0
    %v693 = vrot.slane %v692, 4
    %v694 = vadd.f32 %v692, %v693
    %v695 = vrot.slane %v694, 2
    %v696 = vadd.f32 %v694, %v695
    %v697 = vrot.slane %v696, 1
    %v698 = vadd.f32 %v696, %v697
    %v699 = vsel %vm423, %v627, 0.0
    %v700 = vrot.slane %v699, 4
    %v701 = vadd.f32 %v699, %v700
    %v702 = vrot.slane %v701, 2
    %v703 = vadd.f32 %v701, %v702
    %v704 = vrot.slane %v703, 1
    %v705 = vadd.f32 %v703, %v704
    %v706 = vsel %vm423, %v629, 0.0
    %v707 = vrot.slane %v706, 4
    %v708 = vadd.f32 %v706, %v707
    %v709 = vrot.slane %v708, 2
    %v710 = vadd.f32 %v708, %v709
    %v711 = vrot.slane %v710, 1
    %v712 = vadd.f32 %v710, %v711
    %v713 = vsel %vm423, %v631, 0.0
    %v714 = vrot.slane %v713, 4
    %v715 = vadd.f32 %v713, %v714
    %v716 = vrot.slane %v715, 2
    %v717 = vadd.f32 %v715, %v716
    %v718 = vrot.slane %v717, 1
    %v719 = vadd.f32 %v717, %v718
    %v720 = vsel %vm423, %v633, 0.0
    %v721 = vrot.slane %v720, 4
    %v722 = vadd.f32 %v720, %v721
    %v723 = vrot.slane %v722, 2
    %v724 = vadd.f32 %v722, %v723
    %v725 = vrot.slane %v724, 1
    %v726 = vadd.f32 %v724, %v725
    %v727 = vsel %vm423, %v635, 0.0
    %v728 = vrot.slane %v727, 4
    %v729 = vadd.f32 %v727, %v728
    %v730 = vrot.slane %v729, 2
    %v731 = vadd.f32 %v729, %v730
    %v732 = vrot.slane %v731, 1
    %v733 = vadd.f32 %v731, %v732
    %v734 = vsel %vm423, %v637, 0.0
    %v735 = vrot.slane %v734, 4
    %v736 = vadd.f32 %v734, %v735
    %v737 = vrot.slane %v736, 2
    %v738 = vadd.f32 %v736, %v737
    %v739 = vrot.slane %v738, 1
    %v740 = vadd.f32 %v738, %v739
    %v741 = vsel %vm423, %v639, 0.0
    %v742 = vrot.slane %v741, 4
    %v743 = vadd.f32 %v741, %v742
    %v744 = vrot.slane %v743, 2
    %v745 = vadd.f32 %v743, %v744
    %v746 = vrot.slane %v745, 1
    %v747 = vadd.f32 %v745, %v746
    %v748 = vsel %vm423, %v641, 0.0
    %v749 = vrot.slane %v748, 4
    %v750 = vadd.f32 %v748, %v749
    %v751 = vrot.slane %v750, 2
    %v752 = vadd.f32 %v750, %v751
    %v753 = vrot.slane %v752, 1
    %v754 = vadd.f32 %v752, %v753
    %v755 = vsel %vm423, %v643, 0.0
    %v756 = vrot.slane %v755, 4
    %v757 = vadd.f32 %v755, %v756
    %v758 = vrot.slane %v757, 2
    %v759 = vadd.f32 %v757, %v758
    %v760 = vrot.slane %v759, 1
    %v761 = vadd.f32 %v759, %v760
    %v762 = vsel %vm423, %v645, 0.0
    %v763 = vrot.slane %v762, 4
    %v764 = vadd.f32 %v762, %v763
    %v765 = vrot.slane %v764, 2
    %v766 = vadd.f32 %v764, %v765
    %v767 = vrot.slane %v766, 1
    %v768 = vadd.f32 %v766, %v767
    %v769 = vsel %vm423, %v647, 0.0
    %v770 = vrot.slane %v769, 4
    %v771 = vadd.f32 %v769, %v770
    %v772 = vrot.slane %v771, 2
    %v773 = vadd.f32 %v771, %v772
    %v774 = vrot.slane %v773, 1
    %v775 = vadd.f32 %v773, %v774
    %v776 = vsel %vm423, %v649, 0.0
    %v777 = vrot.slane %v776, 4
    %v778 = vadd.f32 %v776, %v777
    %v779 = vrot.slane %v778, 2
    %v780 = vadd.f32 %v778, %v779
    %v781 = vrot.slane %v780, 1
    %v782 = vadd.f32 %v780, %v781
    %v783 = vsel %vm423, %v651, 0.0
    %v784 = vrot.slane %v783, 4
    %v785 = vadd.f32 %v783, %v784
    %v786 = vrot.slane %v785, 2
    %v787 = vadd.f32 %v785, %v786
    %v788 = vrot.slane %v787, 1
    %v789 = vadd.f32 %v787, %v788
    %v790 = vsel %vm423, %v653, 0.0
    %v791 = vrot.slane %v790, 4
    %v792 = vadd.f32 %v790, %v791
    %v793 = vrot.slane %v792, 2
    %v794 = vadd.f32 %v792, %v793
    %v795 = vrot.slane %v794, 1
    %v796 = vadd.f32 %v794, %v795
    %v797 = vsel %vm423, %v655, 0.0
    %v798 = vrot.slane %v797, 4
    %v799 = vadd.f32 %v797, %v798
    %v800 = vrot.slane %v799, 2
    %v801 = vadd.f32 %v799, %v800
    %v802 = vrot.slane %v801, 1
    %v803 = vadd.f32 %v801, %v802
    %v804 = vsel %vm423, %v657, 0.0
    %v805 = vrot.slane %v804, 4
    %v806 = vadd.f32 %v804, %v805
    %v807 = vrot.slane %v806, 2
    %v808 = vadd.f32 %v806, %v807
    %v809 = vrot.slane %v808, 1
    %v810 = vadd.f32 %v808, %v809
    %v811 = vsel %vm423, %v659, 0.0
    %v812 = vrot.slane %v811, 4
    %v813 = vadd.f32 %v811, %v812
    %v814 = vrot.slane %v813, 2
    %v815 = vadd.f32 %v813, %v814
    %v816 = vrot.slane %v815, 1
    %v817 = vadd.f32 %v815, %v816
    %v818 = vsel %vm423, %v661, 0.0
    %v819 = vrot.slane %v818, 4
    %v820 = vadd.f32 %v818, %v819
    %v821 = vrot.slane %v820, 2
    %v822 = vadd.f32 %v820, %v821
    %v823 = vrot.slane %v822, 1
    %v824 = vadd.f32 %v822, %v823
    %v825 = vsel %vm423, %v663, 0.0
    %v826 = vrot.slane %v825, 4
    %v827 = vadd.f32 %v825, %v826
    %v828 = vrot.slane %v827, 2
    %v829 = vadd.f32 %v827, %v828
    %v830 = vrot.slane %v829, 1
    %v831 = vadd.f32 %v829, %v830
    %v832 = vrcp.pop %v670
    %v833 = vmul.f32 %v670, %v832
    %v834 = vsub.f32 1.0, %v833
    %v835 = vmul.f32 %v832, %v834
    %v836 = vadd.f32 %v832, %v835
    %vm837 = vweird.f32 %v670
    %vm838 = vweird.f32 %v832
    %vm839 = vmor %vm837, %vm838
    %v840 = vsel %vm839, %v832, %v836
    %v841 = vand.u32 2147483647, %v670
    %vm842 = vcmp.eq.f32.partialorder %v841, 8.507059e+37
    %v843 = vand.u32 %v670, 2147483648
    %v844 = vor.u32 1.1754944e-38, %v843
    %v845 = vsel %vm842, %v844, %v840
    %v846 = vmul.f32 %v617, %v845
    %v847 = vrcp.pop %v677
    %v848 = vmul.f32 %v677, %v847
    %v849 = vsub.f32 1.0, %v848
    %v850 = vmul.f32 %v847, %v849
    %v851 = vadd.f32 %v847, %v850
    %vm852 = vweird.f32 %v677
    %vm853 = vweird.f32 %v847
    %vm854 = vmor %vm852, %vm853
    %v855 = vsel %vm854, %v847, %v851
    %v856 = vand.u32 2147483647, %v677
    %vm857 = vcmp.eq.f32.partialorder %v856, 8.507059e+37
    %v858 = vand.u32 %v677, 2147483648
    %v859 = vor.u32 1.1754944e-38, %v858
    %v860 = vsel %vm857, %v859, %v855
    %v861 = vmul.f32 %v619, %v860
    %v862 = vrcp.pop %v684
    %v863 = vmul.f32 %v684, %v862
    %v864 = vsub.f32 1.0, %v863
    %v865 = vmul.f32 %v862, %v864
    %v866 = vadd.f32 %v862, %v865
    %vm867 = vweird.f32 %v684
    %vm868 = vweird.f32 %v862
    %vm869 = vmor %vm867, %vm868
    %v870 = vsel %vm869, %v862, %v866
    %v871 = vand.u32 2147483647, %v684
    %vm872 = vcmp.eq.f32.partialorder %v871, 8.507059e+37
    %v873 = vand.u32 %v684, 2147483648
    %v874 = vor.u32 1.1754944e-38, %v873
    %v875 = vsel %vm872, %v874, %v870
    %v876 = vmul.f32 %v621, %v875
    %v877 = vrcp.pop %v691
    %v878 = vmul.f32 %v691, %v877
    %v879 = vsub.f32 1.0, %v878
    %v880 = vmul.f32 %v877, %v879
    %v881 = vadd.f32 %v877, %v880
    %vm882 = vweird.f32 %v691
    %vm883 = vweird.f32 %v877
    %vm884 = vmor %vm882, %vm883
    %v885 = vsel %vm884, %v877, %v881
    %v886 = vand.u32 2147483647, %v691
    %vm887 = vcmp.eq.f32.partialorder %v886, 8.507059e+37
    %v888 = vand.u32 %v691, 2147483648
    %v889 = vor.u32 1.1754944e-38, %v888
    %v890 = vsel %vm887, %v889, %v885
    %v891 = vmul.f32 %v623, %v890
    %v892 = vrcp.pop %v698
    %v893 = vmul.f32 %v698, %v892
    %v894 = vsub.f32 1.0, %v893
    %v895 = vmul.f32 %v892, %v894
    %v896 = vadd.f32 %v892, %v895
    %vm897 = vweird.f32 %v698
    %vm898 = vweird.f32 %v892
    %vm899 = vmor %vm897, %vm898
    %v900 = vsel %vm899, %v892, %v896
    %v901 = vand.u32 2147483647, %v698
    %vm902 = vcmp.eq.f32.partialorder %v901, 8.507059e+37
    %v903 = vand.u32 %v698, 2147483648
    %v904 = vor.u32 1.1754944e-38, %v903
    %v905 = vsel %vm902, %v904, %v900
    %v906 = vmul.f32 %v625, %v905
    %v907 = vrcp.pop %v705
    %v908 = vmul.f32 %v705, %v907
    %v909 = vsub.f32 1.0, %v908
    %v910 = vmul.f32 %v907, %v909
    %v911 = vadd.f32 %v907, %v910
    %vm912 = vweird.f32 %v705
    %vm913 = vweird.f32 %v907
    %vm914 = vmor %vm912, %vm913
    %v915 = vsel %vm914, %v907, %v911
    %v916 = vand.u32 2147483647, %v705
    %vm917 = vcmp.eq.f32.partialorder %v916, 8.507059e+37
    %v918 = vand.u32 %v705, 2147483648
    %v919 = vor.u32 1.1754944e-38, %v918
    %v920 = vsel %vm917, %v919, %v915
    %v921 = vmul.f32 %v627, %v920
    %v922 = vrcp.pop %v712
    %v923 = vmul.f32 %v712, %v922
    %v924 = vsub.f32 1.0, %v923
    %v925 = vmul.f32 %v922, %v924
    %v926 = vadd.f32 %v922, %v925
    %vm927 = vweird.f32 %v712
    %vm928 = vweird.f32 %v922
    %vm929 = vmor %vm927, %vm928
    %v930 = vsel %vm929, %v922, %v926
    %v931 = vand.u32 2147483647, %v712
    %vm932 = vcmp.eq.f32.partialorder %v931, 8.507059e+37
    %v933 = vand.u32 %v712, 2147483648
    %v934 = vor.u32 1.1754944e-38, %v933
    %v935 = vsel %vm932, %v934, %v930
    %v936 = vmul.f32 %v629, %v935
    %v937 = vrcp.pop %v719
    %v938 = vmul.f32 %v719, %v937
    %v939 = vsub.f32 1.0, %v938
    %v940 = vmul.f32 %v937, %v939
    %v941 = vadd.f32 %v937, %v940
    %vm942 = vweird.f32 %v719
    %vm943 = vweird.f32 %v937
    %vm944 = vmor %vm942, %vm943
    %v945 = vsel %vm944, %v937, %v941
    %v946 = vand.u32 2147483647, %v719
    %vm947 = vcmp.eq.f32.partialorder %v946, 8.507059e+37
    %v948 = vand.u32 %v719, 2147483648
    %v949 = vor.u32 1.1754944e-38, %v948
    %v950 = vsel %vm947, %v949, %v945
    %v951 = vmul.f32 %v631, %v950
    %v952 = vrcp.pop %v726
    %v953 = vmul.f32 %v726, %v952
    %v954 = vsub.f32 1.0, %v953
    %v955 = vmul.f32 %v952, %v954
    %v956 = vadd.f32 %v952, %v955
    %vm957 = vweird.f32 %v726
    %vm958 = vweird.f32 %v952
    %vm959 = vmor %vm957, %vm958
    %v960 = vsel %vm959, %v952, %v956
    %v961 = vand.u32 2147483647, %v726
    %vm962 = vcmp.eq.f32.partialorder %v961, 8.507059e+37
    %v963 = vand.u32 %v726, 2147483648
    %v964 = vor.u32 1.1754944e-38, %v963
    %v965 = vsel %vm962, %v964, %v960
    %v966 = vmul.f32 %v633, %v965
    %v967 = vrcp.pop %v733
    %v968 = vmul.f32 %v733, %v967
    %v969 = vsub.f32 1.0, %v968
    %v970 = vmul.f32 %v967, %v969
    %v971 = vadd.f32 %v967, %v970
    %vm972 = vweird.f32 %v733
    %vm973 = vweird.f32 %v967
    %vm974 = vmor %vm972, %vm973
    %v975 = vsel %vm974, %v967, %v971
    %v976 = vand.u32 2147483647, %v733
    %vm977 = vcmp.eq.f32.partialorder %v976, 8.507059e+37
    %v978 = vand.u32 %v733, 2147483648
    %v979 = vor.u32 1.1754944e-38, %v978
    %v980 = vsel %vm977, %v979, %v975
    %v981 = vmul.f32 %v635, %v980
    %v982 = vrcp.pop %v740
    %v983 = vmul.f32 %v740, %v982
    %v984 = vsub.f32 1.0, %v983
    %v985 = vmul.f32 %v982, %v984
    %v986 = vadd.f32 %v982, %v985
    %vm987 = vweird.f32 %v740
    %vm988 = vweird.f32 %v982
    %vm989 = vmor %vm987, %vm988
    %v990 = vsel %vm989, %v982, %v986
    %v991 = vand.u32 2147483647, %v740
    %vm992 = vcmp.eq.f32.partialorder %v991, 8.507059e+37
    %v993 = vand.u32 %v740, 2147483648
    %v994 = vor.u32 1.1754944e-38, %v993
    %v995 = vsel %vm992, %v994, %v990
    %v996 = vmul.f32 %v637, %v995
    %v997 = vrcp.pop %v747
    %v998 = vmul.f32 %v747, %v997
    %v999 = vsub.f32 1.0, %v998
    %v1000 = vmul.f32 %v997, %v999
    %v1001 = vadd.f32 %v997, %v1000
    %vm1002 = vweird.f32 %v747
    %vm1003 = vweird.f32 %v997
    %vm1004 = vmor %vm1002, %vm1003
    %v1005 = vsel %vm1004, %v997, %v1001
    %v1006 = vand.u32 2147483647, %v747
    %vm1007 = vcmp.eq.f32.partialorder %v1006, 8.507059e+37
    %v1008 = vand.u32 %v747, 2147483648
    %v1009 = vor.u32 1.1754944e-38, %v1008
    %v1010 = vsel %vm1007, %v1009, %v1005
    %v1011 = vmul.f32 %v639, %v1010
    %v1012 = vrcp.pop %v754
    %v1013 = vmul.f32 %v754, %v1012
    %v1014 = vsub.f32 1.0, %v1013
    %v1015 = vmul.f32 %v1012, %v1014
    %v1016 = vadd.f32 %v1012, %v1015
    %vm1017 = vweird.f32 %v754
    %vm1018 = vweird.f32 %v1012
    %vm1019 = vmor %vm1017, %vm1018
    %v1020 = vsel %vm1019, %v1012, %v1016
    %v1021 = vand.u32 2147483647, %v754
    %vm1022 = vcmp.eq.f32.partialorder %v1021, 8.507059e+37
    %v1023 = vand.u32 %v754, 2147483648
    %v1024 = vor.u32 1.1754944e-38, %v1023
    %v1025 = vsel %vm1022, %v1024, %v1020
    %v1026 = vmul.f32 %v641, %v1025
    %v1027 = vrcp.pop %v761
    %v1028 = vmul.f32 %v761, %v1027
    %v1029 = vsub.f32 1.0, %v1028
    %v1030 = vmul.f32 %v1027, %v1029
    %v1031 = vadd.f32 %v1027, %v1030
    %vm1032 = vweird.f32 %v761
    %vm1033 = vweird.f32 %v1027
    %vm1034 = vmor %vm1032, %vm1033
    %v1035 = vsel %vm1034, %v1027, %v1031
    %v1036 = vand.u32 2147483647, %v761
    %vm1037 = vcmp.eq.f32.partialorder %v1036, 8.507059e+37
    %v1038 = vand.u32 %v761, 2147483648
    %v1039 = vor.u32 1.1754944e-38, %v1038
    %v1040 = vsel %vm1037, %v1039, %v1035
    %v1041 = vmul.f32 %v643, %v1040
    %v1042 = vrcp.pop %v768
    %v1043 = vmul.f32 %v768, %v1042
    %v1044 = vsub.f32 1.0, %v1043
    %v1045 = vmul.f32 %v1042, %v1044
    %v1046 = vadd.f32 %v1042, %v1045
    %vm1047 = vweird.f32 %v768
    %vm1048 = vweird.f32 %v1042
    %vm1049 = vmor %vm1047, %vm1048
    %v1050 = vsel %vm1049, %v1042, %v1046
    %v1051 = vand.u32 2147483647, %v768
    %vm1052 = vcmp.eq.f32.partialorder %v1051, 8.507059e+37
    %v1053 = vand.u32 %v768, 2147483648
    %v1054 = vor.u32 1.1754944e-38, %v1053
    %v1055 = vsel %vm1052, %v1054, %v1050
    %v1056 = vmul.f32 %v645, %v1055
    %v1057 = vrcp.pop %v775
    %v1058 = vmul.f32 %v775, %v1057
    %v1059 = vsub.f32 1.0, %v1058
    %v1060 = vmul.f32 %v1057, %v1059
    %v1061 = vadd.f32 %v1057, %v1060
    %vm1062 = vweird.f32 %v775
    %vm1063 = vweird.f32 %v1057
    %vm1064 = vmor %vm1062, %vm1063
    %v1065 = vsel %vm1064, %v1057, %v1061
    %v1066 = vand.u32 2147483647, %v775
    %vm1067 = vcmp.eq.f32.partialorder %v1066, 8.507059e+37
    %v1068 = vand.u32 %v775, 2147483648
    %v1069 = vor.u32 1.1754944e-38, %v1068
    %v1070 = vsel %vm1067, %v1069, %v1065
    %v1071 = vmul.f32 %v647, %v1070
    %v1072 = vrcp.pop %v782
    %v1073 = vmul.f32 %v782, %v1072
    %v1074 = vsub.f32 1.0, %v1073
    %v1075 = vmul.f32 %v1072, %v1074
    %v1076 = vadd.f32 %v1072, %v1075
    %vm1077 = vweird.f32 %v782
    %vm1078 = vweird.f32 %v1072
    %vm1079 = vmor %vm1077, %vm1078
    %v1080 = vsel %vm1079, %v1072, %v1076
    %v1081 = vand.u32 2147483647, %v782
    %vm1082 = vcmp.eq.f32.partialorder %v1081, 8.507059e+37
    %v1083 = vand.u32 %v782, 2147483648
    %v1084 = vor.u32 1.1754944e-38, %v1083
    %v1085 = vsel %vm1082, %v1084, %v1080
    %v1086 = vmul.f32 %v649, %v1085
    %v1087 = vrcp.pop %v789
    %v1088 = vmul.f32 %v789, %v1087
    %v1089 = vsub.f32 1.0, %v1088
    %v1090 = vmul.f32 %v1087, %v1089
    %v1091 = vadd.f32 %v1087, %v1090
    %vm1092 = vweird.f32 %v789
    %vm1093 = vweird.f32 %v1087
    %vm1094 = vmor %vm1092, %vm1093
    %v1095 = vsel %vm1094, %v1087, %v1091
    %v1096 = vand.u32 2147483647, %v789
    %vm1097 = vcmp.eq.f32.partialorder %v1096, 8.507059e+37
    %v1098 = vand.u32 %v789, 2147483648
    %v1099 = vor.u32 1.1754944e-38, %v1098
    %v1100 = vsel %vm1097, %v1099, %v1095
    %v1101 = vmul.f32 %v651, %v1100
    %v1102 = vrcp.pop %v796
    %v1103 = vmul.f32 %v796, %v1102
    %v1104 = vsub.f32 1.0, %v1103
    %v1105 = vmul.f32 %v1102, %v1104
    %v1106 = vadd.f32 %v1102, %v1105
    %vm1107 = vweird.f32 %v796
    %vm1108 = vweird.f32 %v1102
    %vm1109 = vmor %vm1107, %vm1108
    %v1110 = vsel %vm1109, %v1102, %v1106
    %v1111 = vand.u32 2147483647, %v796
    %vm1112 = vcmp.eq.f32.partialorder %v1111, 8.507059e+37
    %v1113 = vand.u32 %v796, 2147483648
    %v1114 = vor.u32 1.1754944e-38, %v1113
    %v1115 = vsel %vm1112, %v1114, %v1110
    %v1116 = vmul.f32 %v653, %v1115
    %v1117 = vrcp.pop %v803
    %v1118 = vmul.f32 %v803, %v1117
    %v1119 = vsub.f32 1.0, %v1118
    %v1120 = vmul.f32 %v1117, %v1119
    %v1121 = vadd.f32 %v1117, %v1120
    %vm1122 = vweird.f32 %v803
    %vm1123 = vweird.f32 %v1117
    %vm1124 = vmor %vm1122, %vm1123
    %v1125 = vsel %vm1124, %v1117, %v1121
    %v1126 = vand.u32 2147483647, %v803
    %vm1127 = vcmp.eq.f32.partialorder %v1126, 8.507059e+37
    %v1128 = vand.u32 %v803, 2147483648
    %v1129 = vor.u32 1.1754944e-38, %v1128
    %v1130 = vsel %vm1127, %v1129, %v1125
    %v1131 = vmul.f32 %v655, %v1130
    %v1132 = vrcp.pop %v810
    %v1133 = vmul.f32 %v810, %v1132
    %v1134 = vsub.f32 1.0, %v1133
    %v1135 = vmul.f32 %v1132, %v1134
    %v1136 = vadd.f32 %v1132, %v1135
    %vm1137 = vweird.f32 %v810
    %vm1138 = vweird.f32 %v1132
    %vm1139 = vmor %vm1137, %vm1138
    %v1140 = vsel %vm1139, %v1132, %v1136
    %v1141 = vand.u32 2147483647, %v810
    %vm1142 = vcmp.eq.f32.partialorder %v1141, 8.507059e+37
    %v1143 = vand.u32 %v810, 2147483648
    %v1144 = vor.u32 1.1754944e-38, %v1143
    %v1145 = vsel %vm1142, %v1144, %v1140
    %v1146 = vmul.f32 %v657, %v1145
    %v1147 = vrcp.pop %v817
    %v1148 = vmul.f32 %v817, %v1147
    %v1149 = vsub.f32 1.0, %v1148
    %v1150 = vmul.f32 %v1147, %v1149
    %v1151 = vadd.f32 %v1147, %v1150
    %vm1152 = vweird.f32 %v817
    %vm1153 = vweird.f32 %v1147
    %vm1154 = vmor %vm1152, %vm1153
    %v1155 = vsel %vm1154, %v1147, %v1151
    %v1156 = vand.u32 2147483647, %v817
    %vm1157 = vcmp.eq.f32.partialorder %v1156, 8.507059e+37
    %v1158 = vand.u32 %v817, 2147483648
    %v1159 = vor.u32 1.1754944e-38, %v1158
    %v1160 = vsel %vm1157, %v1159, %v1155
    %v1161 = vmul.f32 %v659, %v1160
    %v1162 = vrcp.pop %v824
    %v1163 = vmul.f32 %v824, %v1162
    %v1164 = vsub.f32 1.0, %v1163
    %v1165 = vmul.f32 %v1162, %v1164
    %v1166 = vadd.f32 %v1162, %v1165
    %vm1167 = vweird.f32 %v824
    %vm1168 = vweird.f32 %v1162
    %vm1169 = vmor %vm1167, %vm1168
    %v1170 = vsel %vm1169, %v1162, %v1166
    %v1171 = vand.u32 2147483647, %v824
    %vm1172 = vcmp.eq.f32.partialorder %v1171, 8.507059e+37
    %v1173 = vand.u32 %v824, 2147483648
    %v1174 = vor.u32 1.1754944e-38, %v1173
    %v1175 = vsel %vm1172, %v1174, %v1170
    %v1176 = vmul.f32 %v661, %v1175
    %v1177 = vrcp.pop %v831
    %v1178 = vmul.f32 %v831, %v1177
    %v1179 = vsub.f32 1.0, %v1178
    %v1180 = vmul.f32 %v1177, %v1179
    %v1181 = vadd.f32 %v1177, %v1180
    %vm1182 = vweird.f32 %v831
    %vm1183 = vweird.f32 %v1177
    %vm1184 = vmor %vm1182, %vm1183
    %v1185 = vsel %vm1184, %v1177, %v1181
    %v1186 = vand.u32 2147483647, %v831
    %vm1187 = vcmp.eq.f32.partialorder %v1186, 8.507059e+37
    %v1188 = vand.u32 %v831, 2147483648
    %v1189 = vor.u32 1.1754944e-38, %v1188
    %v1190 = vsel %vm1187, %v1189, %v1185
    %v1191 = vmul.f32 %v663, %v1190
    %1193 = vset.pattern.permute.xlu0 16
    %1194 = vperm.xlu0 %1193, %v846
    %v1195 = vpop.permute.xlu0 %1194
    %1198 = vset.pattern.permute.xlu0 16
    %1199 = vperm.xlu0 %1198, %v861
    %v1200 = vpop.permute.xlu0 %1199
    %1203 = vset.pattern.permute.xlu0 16
    %1204 = vperm.xlu0 %1203, %v876
    %v1205 = vpop.permute.xlu0 %1204
    %1208 = vset.pattern.permute.xlu0 16
    %1209 = vperm.xlu0 %1208, %v891
    %v1210 = vpop.permute.xlu0 %1209
    %1213 = vset.pattern.permute.xlu0 16
    %1214 = vperm.xlu0 %1213, %v906
    %v1215 = vpop.permute.xlu0 %1214
    %1218 = vset.pattern.permute.xlu0 16
    %1219 = vperm.xlu0 %1218, %v921
    %v1220 = vpop.permute.xlu0 %1219
    %1223 = vset.pattern.permute.xlu0 16
    %1224 = vperm.xlu0 %1223, %v936
    %v1225 = vpop.permute.xlu0 %1224
    %1228 = vset.pattern.permute.xlu0 16
    %1229 = vperm.xlu0 %1228, %v951
    %v1230 = vpop.permute.xlu0 %1229
    %1233 = vset.pattern.permute.xlu0 16
    %1234 = vperm.xlu0 %1233, %v966
    %v1235 = vpop.permute.xlu0 %1234
    %1238 = vset.pattern.permute.xlu0 16
    %1239 = vperm.xlu0 %1238, %v981
    %v1240 = vpop.permute.xlu0 %1239
    %1243 = vset.pattern.permute.xlu0 16
    %1244 = vperm.xlu0 %1243, %v996
    %v1245 = vpop.permute.xlu0 %1244
    %1248 = vset.pattern.permute.xlu0 16
    %1249 = vperm.xlu0 %1248, %v1011
    %v1250 = vpop.permute.xlu0 %1249
    %1253 = vset.pattern.permute.xlu0 16
    %1254 = vperm.xlu0 %1253, %v1026
    %v1255 = vpop.permute.xlu0 %1254
    %1258 = vset.pattern.permute.xlu0 16
    %1259 = vperm.xlu0 %1258, %v1041
    %v1260 = vpop.permute.xlu0 %1259
    %1263 = vset.pattern.permute.xlu0 16
    %1264 = vperm.xlu0 %1263, %v1056
    %v1265 = vpop.permute.xlu0 %1264
    %1268 = vset.pattern.permute.xlu0 16
    %1269 = vperm.xlu0 %1268, %v1071
    %v1270 = vpop.permute.xlu0 %1269
    %1273 = vset.pattern.permute.xlu0 16
    %1274 = vperm.xlu0 %1273, %v1086
    %v1275 = vpop.permute.xlu0 %1274
    %1278 = vset.pattern.permute.xlu0 16
    %1279 = vperm.xlu0 %1278, %v1101
    %v1280 = vpop.permute.xlu0 %1279
    %1283 = vset.pattern.permute.xlu0 16
    %1284 = vperm.xlu0 %1283, %v1116
    %v1285 = vpop.permute.xlu0 %1284
    %1288 = vset.pattern.permute.xlu0 16
    %1289 = vperm.xlu0 %1288, %v1131
    %v1290 = vpop.permute.xlu0 %1289
    %1293 = vset.pattern.permute.xlu0 16
    %1294 = vperm.xlu0 %1293, %v1146
    %v1295 = vpop.permute.xlu0 %1294
    %1298 = vset.pattern.permute.xlu0 16
    %1299 = vperm.xlu0 %1298, %v1161
    %v1300 = vpop.permute.xlu0 %1299
    %1303 = vset.pattern.permute.xlu0 16
    %1304 = vperm.xlu0 %1303, %v1176
    %v1305 = vpop.permute.xlu0 %1304
    %1308 = vset.pattern.permute.xlu0 16
    %1309 = vperm.xlu0 %1308, %v1191
    %v1310 = vpop.permute.xlu0 %1309
    %v1312 = vmul.f32 %v352, %v1195
    %v1313 = vmul.f32 %v355, %v1200
    %v1314 = vmul.f32 %v358, %v1205
    %v1315 = vmul.f32 %v361, %v1210
    %v1316 = vmul.f32 %v364, %v1215
    %v1317 = vmul.f32 %v367, %v1220
    %v1318 = vmul.f32 %v370, %v1225
    %v1319 = vmul.f32 %v373, %v1230
    %v1320 = vmul.f32 %v376, %v1235
    %v1321 = vmul.f32 %v379, %v1240
    %v1322 = vmul.f32 %v382, %v1245
    %v1323 = vmul.f32 %v385, %v1250
    %v1324 = vmul.f32 %v388, %v1255
    %v1325 = vmul.f32 %v391, %v1260
    %v1326 = vmul.f32 %v394, %v1265
    %v1327 = vmul.f32 %v397, %v1270
    %v1328 = vmul.f32 %v400, %v1275
    %v1329 = vmul.f32 %v403, %v1280
    %v1330 = vmul.f32 %v406, %v1285
    %v1331 = vmul.f32 %v409, %v1290
    %v1332 = vmul.f32 %v412, %v1295
    %v1333 = vmul.f32 %v415, %v1300
    %v1334 = vmul.f32 %v418, %v1305
    %v1335 = vmul.f32 %v421, %v1310
    %vm1336 = vcmask 130048
    %v1337 = vsel %vm1336, %v1312, 0.0
    %v1338 = vrot.slane %v1337, 4
    %v1339 = vadd.f32 %v1337, %v1338
    %v1340 = vrot.slane %v1339, 2
    %v1341 = vadd.f32 %v1339, %v1340
    %v1342 = vrot.slane %v1341, 1
    %v1343 = vadd.f32 %v1341, %v1342
    %v1344 = vsel %vm1336, %v1313, 0.0
    %v1345 = vrot.slane %v1344, 4
    %v1346 = vadd.f32 %v1344, %v1345
    %v1347 = vrot.slane %v1346, 2
    %v1348 = vadd.f32 %v1346, %v1347
    %v1349 = vrot.slane %v1348, 1
    %v1350 = vadd.f32 %v1348, %v1349
    %v1351 = vsel %vm1336, %v1314, 0.0
    %v1352 = vrot.slane %v1351, 4
    %v1353 = vadd.f32 %v1351, %v1352
    %v1354 = vrot.slane %v1353, 2
    %v1355 = vadd.f32 %v1353, %v1354
    %v1356 = vrot.slane %v1355, 1
    %v1357 = vadd.f32 %v1355, %v1356
    %v1358 = vsel %vm1336, %v1315, 0.0
    %v1359 = vrot.slane %v1358, 4
    %v1360 = vadd.f32 %v1358, %v1359
    %v1361 = vrot.slane %v1360, 2
    %v1362 = vadd.f32 %v1360, %v1361
    %v1363 = vrot.slane %v1362, 1
    %v1364 = vadd.f32 %v1362, %v1363
    %v1365 = vsel %vm1336, %v1316, 0.0
    %v1366 = vrot.slane %v1365, 4
    %v1367 = vadd.f32 %v1365, %v1366
    %v1368 = vrot.slane %v1367, 2
    %v1369 = vadd.f32 %v1367, %v1368
    %v1370 = vrot.slane %v1369, 1
    %v1371 = vadd.f32 %v1369, %v1370
    %v1372 = vsel %vm1336, %v1317, 0.0
    %v1373 = vrot.slane %v1372, 4
    %v1374 = vadd.f32 %v1372, %v1373
    %v1375 = vrot.slane %v1374, 2
    %v1376 = vadd.f32 %v1374, %v1375
    %v1377 = vrot.slane %v1376, 1
    %v1378 = vadd.f32 %v1376, %v1377
    %v1379 = vsel %vm1336, %v1318, 0.0
    %v1380 = vrot.slane %v1379, 4
    %v1381 = vadd.f32 %v1379, %v1380
    %v1382 = vrot.slane %v1381, 2
    %v1383 = vadd.f32 %v1381, %v1382
    %v1384 = vrot.slane %v1383, 1
    %v1385 = vadd.f32 %v1383, %v1384
    %v1386 = vsel %vm1336, %v1319, 0.0
    %v1387 = vrot.slane %v1386, 4
    %v1388 = vadd.f32 %v1386, %v1387
    %v1389 = vrot.slane %v1388, 2
    %v1390 = vadd.f32 %v1388, %v1389
    %v1391 = vrot.slane %v1390, 1
    %v1392 = vadd.f32 %v1390, %v1391
    %v1393 = vsel %vm1336, %v1320, 0.0
    %v1394 = vrot.slane %v1393, 4
    %v1395 = vadd.f32 %v1393, %v1394
    %v1396 = vrot.slane %v1395, 2
    %v1397 = vadd.f32 %v1395, %v1396
    %v1398 = vrot.slane %v1397, 1
    %v1399 = vadd.f32 %v1397, %v1398
    %v1400 = vsel %vm1336, %v1321, 0.0
    %v1401 = vrot.slane %v1400, 4
    %v1402 = vadd.f32 %v1400, %v1401
    %v1403 = vrot.slane %v1402, 2
    %v1404 = vadd.f32 %v1402, %v1403
    %v1405 = vrot.slane %v1404, 1
    %v1406 = vadd.f32 %v1404, %v1405
    %v1407 = vsel %vm1336, %v1322, 0.0
    %v1408 = vrot.slane %v1407, 4
    %v1409 = vadd.f32 %v1407, %v1408
    %v1410 = vrot.slane %v1409, 2
    %v1411 = vadd.f32 %v1409, %v1410
    %v1412 = vrot.slane %v1411, 1
    %v1413 = vadd.f32 %v1411, %v1412
    %v1414 = vsel %vm1336, %v1323, 0.0
    %v1415 = vrot.slane %v1414, 4
    %v1416 = vadd.f32 %v1414, %v1415
    %v1417 = vrot.slane %v1416, 2
    %v1418 = vadd.f32 %v1416, %v1417
    %v1419 = vrot.slane %v1418, 1
    %v1420 = vadd.f32 %v1418, %v1419
    %v1421 = vsel %vm1336, %v1324, 0.0
    %v1422 = vrot.slane %v1421, 4
    %v1423 = vadd.f32 %v1421, %v1422
    %v1424 = vrot.slane %v1423, 2
    %v1425 = vadd.f32 %v1423, %v1424
    %v1426 = vrot.slane %v1425, 1
    %v1427 = vadd.f32 %v1425, %v1426
    %v1428 = vsel %vm1336, %v1325, 0.0
    %v1429 = vrot.slane %v1428, 4
    %v1430 = vadd.f32 %v1428, %v1429
    %v1431 = vrot.slane %v1430, 2
    %v1432 = vadd.f32 %v1430, %v1431
    %v1433 = vrot.slane %v1432, 1
    %v1434 = vadd.f32 %v1432, %v1433
    %v1435 = vsel %vm1336, %v1326, 0.0
    %v1436 = vrot.slane %v1435, 4
    %v1437 = vadd.f32 %v1435, %v1436
    %v1438 = vrot.slane %v1437, 2
    %v1439 = vadd.f32 %v1437, %v1438
    %v1440 = vrot.slane %v1439, 1
    %v1441 = vadd.f32 %v1439, %v1440
    %v1442 = vsel %vm1336, %v1327, 0.0
    %v1443 = vrot.slane %v1442, 4
    %v1444 = vadd.f32 %v1442, %v1443
    %v1445 = vrot.slane %v1444, 2
    %v1446 = vadd.f32 %v1444, %v1445
    %v1447 = vrot.slane %v1446, 1
    %v1448 = vadd.f32 %v1446, %v1447
    %v1449 = vsel %vm1336, %v1328, 0.0
    %v1450 = vrot.slane %v1449, 4
    %v1451 = vadd.f32 %v1449, %v1450
    %v1452 = vrot.slane %v1451, 2
    %v1453 = vadd.f32 %v1451, %v1452
    %v1454 = vrot.slane %v1453, 1
    %v1455 = vadd.f32 %v1453, %v1454
    %v1456 = vsel %vm1336, %v1329, 0.0
    %v1457 = vrot.slane %v1456, 4
    %v1458 = vadd.f32 %v1456, %v1457
    %v1459 = vrot.slane %v1458, 2
    %v1460 = vadd.f32 %v1458, %v1459
    %v1461 = vrot.slane %v1460, 1
    %v1462 = vadd.f32 %v1460, %v1461
    %v1463 = vsel %vm1336, %v1330, 0.0
    %v1464 = vrot.slane %v1463, 4
    %v1465 = vadd.f32 %v1463, %v1464
    %v1466 = vrot.slane %v1465, 2
    %v1467 = vadd.f32 %v1465, %v1466
    %v1468 = vrot.slane %v1467, 1
    %v1469 = vadd.f32 %v1467, %v1468
    %v1470 = vsel %vm1336, %v1331, 0.0
    %v1471 = vrot.slane %v1470, 4
    %v1472 = vadd.f32 %v1470, %v1471
    %v1473 = vrot.slane %v1472, 2
    %v1474 = vadd.f32 %v1472, %v1473
    %v1475 = vrot.slane %v1474, 1
    %v1476 = vadd.f32 %v1474, %v1475
    %v1477 = vsel %vm1336, %v1332, 0.0
    %v1478 = vrot.slane %v1477, 4
    %v1479 = vadd.f32 %v1477, %v1478
    %v1480 = vrot.slane %v1479, 2
    %v1481 = vadd.f32 %v1479, %v1480
    %v1482 = vrot.slane %v1481, 1
    %v1483 = vadd.f32 %v1481, %v1482
    %v1484 = vsel %vm1336, %v1333, 0.0
    %v1485 = vrot.slane %v1484, 4
    %v1486 = vadd.f32 %v1484, %v1485
    %v1487 = vrot.slane %v1486, 2
    %v1488 = vadd.f32 %v1486, %v1487
    %v1489 = vrot.slane %v1488, 1
    %v1490 = vadd.f32 %v1488, %v1489
    %v1491 = vsel %vm1336, %v1334, 0.0
    %v1492 = vrot.slane %v1491, 4
    %v1493 = vadd.f32 %v1491, %v1492
    %v1494 = vrot.slane %v1493, 2
    %v1495 = vadd.f32 %v1493, %v1494
    %v1496 = vrot.slane %v1495, 1
    %v1497 = vadd.f32 %v1495, %v1496
    %v1498 = vsel %vm1336, %v1335, 0.0
    %v1499 = vrot.slane %v1498, 4
    %v1500 = vadd.f32 %v1498, %v1499
    %v1501 = vrot.slane %v1500, 2
    %v1502 = vadd.f32 %v1500, %v1501
    %v1503 = vrot.slane %v1502, 1
    %v1504 = vadd.f32 %v1502, %v1503
    %vm1529 = vcmask 1041409
    %v1530 = vsel %vm1529, %v1350, %v1343
    %vm1531 = vcmask 1042434
    %v1532 = vsel %vm1531, %v1357, %v1530
    %vm1533 = vcmask 1043459
    %v1534 = vsel %vm1533, %v1364, %v1532
    %vm1535 = vcmask 1044484
    %v1536 = vsel %vm1535, %v1371, %v1534
    %vm1537 = vcmask 1045509
    %v1538 = vsel %vm1537, %v1378, %v1536
    %vm1539 = vcmask 1046534
    %v1540 = vsel %vm1539, %v1385, %v1538
    %vm1541 = vcmask 1047559
    %v1542 = vsel %vm1541, %v1392, %v1540
    %v1543 = vsel %vm1529, %v1406, %v1399
    %v1544 = vsel %vm1531, %v1413, %v1543
    %v1545 = vsel %vm1533, %v1420, %v1544
    %v1546 = vsel %vm1535, %v1427, %v1545
    %v1547 = vsel %vm1537, %v1434, %v1546
    %v1548 = vsel %vm1539, %v1441, %v1547
    %v1549 = vsel %vm1541, %v1448, %v1548
    %v1550 = vsel %vm1529, %v1462, %v1455
    %v1551 = vsel %vm1531, %v1469, %v1550
    %v1552 = vsel %vm1533, %v1476, %v1551
    %v1553 = vsel %vm1535, %v1483, %v1552
    %v1554 = vsel %vm1537, %v1490, %v1553
    %v1555 = vsel %vm1539, %v1497, %v1554
    %v1556 = vsel %vm1541, %v1504, %v1555
    %1560 = vst.msk [vmem:[%s5] sm:$0xff] %vm1336, %v1542
    %1561 = vst.msk [vmem:[%s5 + $0x8] sm:$0xff] %vm1336, %v1549
    %1562 = vst.msk [vmem:[%s5 + $0x10] sm:$0xff] %vm1336, %v1556
    // Predicated region
    $region26: #{tpu_custom_call.1} parent=1 // pred_check
      _
    $region27: #{tpu_custom_call.1} parent=1 // pred_check_branch
      %1564 = sbr.rel (0) target = $region29
    $region28: #{tpu_custom_call.1} parent=1 // pred_region
      _
    $region29: #{tpu_custom_call.1} parent=1 // pred_fallthru
      _
    // Predicated region
    $region30: #{tpu_custom_call.1} parent=1 // pred_check
      _
    $region31: #{tpu_custom_call.1} parent=1 // pred_check_branch
      %1566 = sbr.rel (0) target = $region33
    $region32: #{tpu_custom_call.1} parent=1 // pred_region
      _
    $region33: #{tpu_custom_call.1} parent=1 // pred_fallthru
      _
    %1567 = vsyncpa [#allocation3], 1

</llo_original>
